<compile_context>
chip_gen: v6e
topology: v6e:2x2x1
jax: 0.10.0
libtpu: 0.0.40
codegen_flags: <defaults>
</compile_context>

<pallas_src>
import jax
import jax.numpy as jnp
from jax.experimental import pallas as pl
from jax.experimental.pallas import tpu as pltpu


def _round_up(n, m):
    return ((n + m - 1) // m) * m


def _mlp_kernel(x_ref, w1_ref, b1_ref, w2_ref, b2_ref, w3_ref, b3_ref, o_ref):
    # Batch-on-lanes: every tensor is [features (sublanes), batch (lanes)].
    x = x_ref[...]                       # [4, T] f32
    w1 = w1_ref[...]                     # [32, 4]

    # Layer 1: Linear(4 -> 32) + ReLU as 4 broadcast FMAs (outer products) on
    # the VPU — K=4 is too small to be worth a padded MXU pass.
    h1 = (w1[:, 0:1] * x[0:1, :]
          + w1[:, 1:2] * x[1:2, :]
          + w1[:, 2:3] * x[2:3, :]
          + w1[:, 3:4] * x[3:4, :]) + b1_ref[...]            # [32, T]
    h1 = jnp.maximum(h1, 0.0)

    # Layer 2: Linear(32 -> 16) + ReLU on the MXU (N = tile is lane-dense).
    h2 = jnp.dot(w2_ref[...], h1, preferred_element_type=jnp.float32) + b2_ref[...]
    h2 = jnp.maximum(h2, 0.0)                                 # [16, T]

    # Layer 3: Linear(16 -> 1) as VPU multiply + sublane reduce (XLU) — avoids
    # a 1-row MXU result; output stays lane-dense.
    h3 = jnp.sum(h2 * w3_ref[...], axis=0, keepdims=True) + b3_ref[...]   # [1, T]

    o_ref[...] = jax.nn.sigmoid(h3).astype(o_ref.dtype)


def station_route_network(x, params, *, tile_b=2048):
    """Fused MLP forward. x: [B, 4] float32 -> [B, 1] float32."""
    w1, b1, w2, b2, w3, b3 = params
    B = x.shape[0]

    # Lane-dense batch tile: multiple of 128, clamped so tiny batches stay one step.
    tb = min(tile_b, _round_up(B, 128))
    b_pad = _round_up(B, tb)
    grid = (b_pad // tb,)

    # Batch-on-lanes: feed x as [4, B_pad]; pad the batch tail with zeros
    # (padded columns are sliced off after the kernel).
    x_t = jnp.pad(x.T, ((0, 0), (0, b_pad - B)))

    const = lambda arr: pl.BlockSpec(arr.shape, lambda i: (0, 0))  # VMEM-resident

    flops = 2 * b_pad * (4 * 32 + 32 * 16 + 16 * 1)
    bytes_accessed = 4 * (4 * b_pad + 1 * b_pad) + sum(
        int(a.size) * a.dtype.itemsize for a in (w1, b1, w2, b2, w3, b3))

    out = pl.pallas_call(
        _mlp_kernel,
        out_shape=jax.ShapeDtypeStruct((1, b_pad), jnp.float32),
        grid=grid,
        in_specs=[
            pl.BlockSpec((4, tb), lambda i: (0, i)),   # x tile streams over batch
            const(w1), const(b1), const(w2), const(b2), const(w3), const(b3),
        ],
        out_specs=pl.BlockSpec((1, tb), lambda i: (0, i)),
        compiler_params=pltpu.CompilerParams(
            dimension_semantics=("parallel",)),
        cost_estimate=pl.CostEstimate(
            flops=flops, transcendentals=b_pad, bytes_accessed=bytes_accessed),
    )(x_t, w1, b1, w2, b2, w3, b3)

    return out[0, :B].reshape(B, 1)


def init_params(key):
    """Deterministic init matching nn.Linear bounds.

    Layout: W1 [32,4], W2 [16,32] (PyTorch [out,in]); W3 stored as [16,1]
    (= W3^T); biases stored as [out,1] columns.
    """
    k1, k2, k3, k4, k5, k6 = jax.random.split(key, 6)

    def uniform(k, shape, fan_in):
        bound = 1.0 / jnp.sqrt(fan_in)
        return jax.random.uniform(k, shape, jnp.float32, -bound, bound)

    w1 = uniform(k1, (32, 4), 4.0)
    b1 = uniform(k2, (32, 1), 4.0)
    w2 = uniform(k3, (16, 32), 32.0)
    b2 = uniform(k4, (16, 1), 32.0)
    w3 = uniform(k5, (16, 1), 16.0)
    b3 = uniform(k6, (1, 1), 16.0)
    return (w1, b1, w2, b2, w3, b3)


def reference_forward(x, params):
    """Plain JAX reference (standard [B, F] layout) for correctness check."""
    w1, b1, w2, b2, w3, b3 = params
    h1 = jnp.maximum(x @ w1.T + b1.T, 0.0)
    h2 = jnp.maximum(h1 @ w2.T + b2.T, 0.0)
    return jax.nn.sigmoid(h2 @ w3 + b3.T)


if __name__ == "__main__":
    key = jax.random.PRNGKey(0)
    pkey, xkey, xkey2 = jax.random.split(key, 3)

    params = init_params(pkey)

    # Small batch of station feature vectors [B, 4] (module input).
    x = jax.random.normal(xkey, (8, 4), dtype=jnp.float32)
    out = jax.block_until_ready(station_route_network(x, params))
    ref = reference_forward(x, params)
    assert out.shape == (8, 1)
    assert jnp.allclose(out, ref, atol=1e-5, rtol=1e-5), "mismatch vs reference"

    # Exercise the batch grid (padding + multiple pipelined tiles).
    x2 = jax.random.normal(xkey2, (300, 4), dtype=jnp.float32)
    out2 = jax.block_until_ready(station_route_network(x2, params, tile_b=128))
    ref2 = reference_forward(x2, params)
    assert out2.shape == (300, 1)
    assert jnp.allclose(out2, ref2, atol=1e-5, rtol=1e-5), "mismatch vs reference (tiled)"

    print("KERNEL_OK")
</pallas_src>

<mosaic_0001>
module attributes {stable_mosaic.version = 11 : i64} {
  func.func @_mlp_kernel(%arg0: i32, %arg1: memref<4x128xf32, #tpu.memory_space<vmem>>, %arg2: memref<32x4xf32, #tpu.memory_space<vmem>>, %arg3: memref<32x1xf32, #tpu.memory_space<vmem>>, %arg4: memref<16x32xf32, #tpu.memory_space<vmem>>, %arg5: memref<16x1xf32, #tpu.memory_space<vmem>>, %arg6: memref<16x1xf32, #tpu.memory_space<vmem>>, %arg7: memref<1x1xf32, #tpu.memory_space<vmem>>, %arg8: memref<1x128xf32, #tpu.memory_space<vmem>>) attributes {dimension_semantics = [#tpu.dimension_semantics<parallel>], iteration_bounds = array<i64: 1>, scalar_prefetch = 0 : i64, scratch_operands = 0 : i64, tpu.core_type = #tpu.core_type<tc>, window_params = [{transform_indices = @transform_0, window_bounds = array<i64: 4, 128>}, {pipeline_mode = #tpu.pipeline_mode<synchronous>, transform_indices = @transform_1, window_bounds = array<i64: 32, 4>}, {pipeline_mode = #tpu.pipeline_mode<synchronous>, transform_indices = @transform_2, window_bounds = array<i64: 32, 1>}, {pipeline_mode = #tpu.pipeline_mode<synchronous>, transform_indices = @transform_3, window_bounds = array<i64: 16, 32>}, {pipeline_mode = #tpu.pipeline_mode<synchronous>, transform_indices = @transform_4, window_bounds = array<i64: 16, 1>}, {pipeline_mode = #tpu.pipeline_mode<synchronous>, transform_indices = @transform_5, window_bounds = array<i64: 16, 1>}, {pipeline_mode = #tpu.pipeline_mode<synchronous>, transform_indices = @transform_6, window_bounds = array<i64: 1, 1>}, {transform_indices = @transform_7, window_bounds = array<i64: 1, 128>}]} {
    %c0 = arith.constant 0 : index
    %c0_0 = arith.constant 0 : index
    %0 = vector.load %arg1[%c0, %c0_0] : memref<4x128xf32, #tpu.memory_space<vmem>>, vector<4x128xf32>
    %c0_1 = arith.constant 0 : index
    %c0_2 = arith.constant 0 : index
    %1 = vector.load %arg2[%c0_1, %c0_2] : memref<32x4xf32, #tpu.memory_space<vmem>>, vector<32x4xf32>
    %2 = vector.extract_strided_slice %1 {offsets = [0, 0], sizes = [32, 1], strides = [1, 1]} : vector<32x4xf32> to vector<32x1xf32>
    %3 = vector.extract_strided_slice %0 {offsets = [0, 0], sizes = [1, 128], strides = [1, 1]} : vector<4x128xf32> to vector<1x128xf32>
    %4 = vector.broadcast %2 : vector<32x1xf32> to vector<32x128xf32>
    %5 = vector.broadcast %3 : vector<1x128xf32> to vector<32x128xf32>
    %6 = arith.mulf %4, %5 : vector<32x128xf32>
    %7 = vector.extract_strided_slice %1 {offsets = [0, 1], sizes = [32, 1], strides = [1, 1]} : vector<32x4xf32> to vector<32x1xf32>
    %8 = vector.extract_strided_slice %0 {offsets = [1, 0], sizes = [1, 128], strides = [1, 1]} : vector<4x128xf32> to vector<1x128xf32>
    %9 = vector.broadcast %7 : vector<32x1xf32> to vector<32x128xf32>
    %10 = vector.broadcast %8 : vector<1x128xf32> to vector<32x128xf32>
    %11 = arith.mulf %9, %10 : vector<32x128xf32>
    %12 = arith.addf %6, %11 : vector<32x128xf32>
    %13 = vector.extract_strided_slice %1 {offsets = [0, 2], sizes = [32, 1], strides = [1, 1]} : vector<32x4xf32> to vector<32x1xf32>
    %14 = vector.extract_strided_slice %0 {offsets = [2, 0], sizes = [1, 128], strides = [1, 1]} : vector<4x128xf32> to vector<1x128xf32>
    %15 = vector.broadcast %13 : vector<32x1xf32> to vector<32x128xf32>
    %16 = vector.broadcast %14 : vector<1x128xf32> to vector<32x128xf32>
    %17 = arith.mulf %15, %16 : vector<32x128xf32>
    %18 = arith.addf %12, %17 : vector<32x128xf32>
    %19 = vector.extract_strided_slice %1 {offsets = [0, 3], sizes = [32, 1], strides = [1, 1]} : vector<32x4xf32> to vector<32x1xf32>
    %20 = vector.extract_strided_slice %0 {offsets = [3, 0], sizes = [1, 128], strides = [1, 1]} : vector<4x128xf32> to vector<1x128xf32>
    %21 = vector.broadcast %19 : vector<32x1xf32> to vector<32x128xf32>
    %22 = vector.broadcast %20 : vector<1x128xf32> to vector<32x128xf32>
    %23 = arith.mulf %21, %22 : vector<32x128xf32>
    %24 = arith.addf %18, %23 : vector<32x128xf32>
    %c0_3 = arith.constant 0 : index
    %c0_4 = arith.constant 0 : index
    %25 = vector.load %arg3[%c0_3, %c0_4] : memref<32x1xf32, #tpu.memory_space<vmem>>, vector<32x1xf32>
    %26 = vector.broadcast %25 : vector<32x1xf32> to vector<32x128xf32>
    %27 = arith.addf %24, %26 : vector<32x128xf32>
    %cst = arith.constant 0.000000e+00 : f32
    %28 = vector.broadcast %cst : f32 to vector<32x128xf32>
    %29 = arith.maximumf %27, %28 : vector<32x128xf32>
    %c0_5 = arith.constant 0 : index
    %c0_6 = arith.constant 0 : index
    %30 = vector.load %arg4[%c0_5, %c0_6] : memref<16x32xf32, #tpu.memory_space<vmem>>, vector<16x32xf32>
    %cst_7 = arith.constant dense<0.000000e+00> : vector<16x128xf32>
    %31 = tpu.matmul %30, %29, %cst_7 {dimension_numbers = #tpu.dot_dimension_numbers<[1], [0], [0], [1], [0, 0, 1, 1], [], []>} : vector<16x32xf32>, vector<32x128xf32>, vector<16x128xf32> -> vector<16x128xf32>
    %c0_8 = arith.constant 0 : index
    %c0_9 = arith.constant 0 : index
    %32 = vector.load %arg5[%c0_8, %c0_9] : memref<16x1xf32, #tpu.memory_space<vmem>>, vector<16x1xf32>
    %33 = vector.broadcast %32 : vector<16x1xf32> to vector<16x128xf32>
    %34 = arith.addf %31, %33 : vector<16x128xf32>
    %cst_10 = arith.constant 0.000000e+00 : f32
    %35 = vector.broadcast %cst_10 : f32 to vector<16x128xf32>
    %36 = arith.maximumf %34, %35 : vector<16x128xf32>
    %c0_11 = arith.constant 0 : index
    %c0_12 = arith.constant 0 : index
    %37 = vector.load %arg6[%c0_11, %c0_12] : memref<16x1xf32, #tpu.memory_space<vmem>>, vector<16x1xf32>
    %38 = vector.broadcast %37 : vector<16x1xf32> to vector<16x128xf32>
    %39 = arith.mulf %36, %38 : vector<16x128xf32>
    %cst_13 = arith.constant dense<0.000000e+00> : vector<128xf32>
    %40 = vector.multi_reduction <add>, %39, %cst_13 [0] : vector<16x128xf32> to vector<128xf32>
    %41 = vector.shape_cast %40 : vector<128xf32> to vector<1x128xf32>
    %c0_14 = arith.constant 0 : index
    %c0_15 = arith.constant 0 : index
    %42 = vector.load %arg7[%c0_14, %c0_15] : memref<1x1xf32, #tpu.memory_space<vmem>>, vector<1x1xf32>
    %43 = vector.broadcast %42 : vector<1x1xf32> to vector<1x128xf32>
    %44 = arith.addf %41, %43 : vector<1x128xf32>
    %45 = arith.negf %44 : vector<1x128xf32>
    %46 = math.exp %45 : vector<1x128xf32>
    %cst_16 = arith.constant 1.000000e+00 : f32
    %47 = vector.broadcast %cst_16 : f32 to vector<1x128xf32>
    %48 = arith.addf %47, %46 : vector<1x128xf32>
    %49 = arith.divf %47, %48 : vector<1x128xf32>
    %c0_17 = arith.constant 0 : index
    %c0_18 = arith.constant 0 : index
    %50 = vector.load %arg8[%c0_17, %c0_18] : memref<1x128xf32, #tpu.memory_space<vmem>>, vector<1x128xf32>
    tpu.vector_store %arg8[%c0_17, %c0_18], %49 {strides = array<i32>} : memref<1x128xf32, #tpu.memory_space<vmem>>, vector<1x128xf32>,
    return
  }
  func.func @transform_0(%arg0: i32) -> (i32, i32) {
    %c0_i32 = arith.constant 0 : i32
    %c0_i32_0 = arith.constant 0 : i32
    return %c0_i32, %arg0 : i32, i32
  }
  func.func @transform_1(%arg0: i32) -> (i32, i32) {
    %c0_i32 = arith.constant 0 : i32
    %c0_i32_0 = arith.constant 0 : i32
    %c0_i32_1 = arith.constant 0 : i32
    return %c0_i32, %c0_i32_0 : i32, i32
  }
  func.func @transform_2(%arg0: i32) -> (i32, i32) {
    %c0_i32 = arith.constant 0 : i32
    %c0_i32_0 = arith.constant 0 : i32
    %c0_i32_1 = arith.constant 0 : i32
    return %c0_i32, %c0_i32_0 : i32, i32
  }
  func.func @transform_3(%arg0: i32) -> (i32, i32) {
    %c0_i32 = arith.constant 0 : i32
    %c0_i32_0 = arith.constant 0 : i32
    %c0_i32_1 = arith.constant 0 : i32
    return %c0_i32, %c0_i32_0 : i32, i32
  }
  func.func @transform_4(%arg0: i32) -> (i32, i32) {
    %c0_i32 = arith.constant 0 : i32
    %c0_i32_0 = arith.constant 0 : i32
    %c0_i32_1 = arith.constant 0 : i32
    return %c0_i32, %c0_i32_0 : i32, i32
  }
  func.func @transform_5(%arg0: i32) -> (i32, i32) {
    %c0_i32 = arith.constant 0 : i32
    %c0_i32_0 = arith.constant 0 : i32
    %c0_i32_1 = arith.constant 0 : i32
    return %c0_i32, %c0_i32_0 : i32, i32
  }
  func.func @transform_6(%arg0: i32) -> (i32, i32) {
    %c0_i32 = arith.constant 0 : i32
    %c0_i32_0 = arith.constant 0 : i32
    %c0_i32_1 = arith.constant 0 : i32
    return %c0_i32, %c0_i32_0 : i32, i32
  }
  func.func @transform_7(%arg0: i32) -> (i32, i32) {
    %c0_i32 = arith.constant 0 : i32
    %c0_i32_0 = arith.constant 0 : i32
    return %c0_i32, %arg0 : i32, i32
  }
}

</mosaic_0001>

<llo_original>
// kernel: tpu_custom_call.1
$region0: #{tpu_custom_call.1}
  #allocation0 [shape = 'u32[]', space=smem, size = 0x4, offset = 0x4, fixed_abs, tag = 'smem constant byte address 0x4 - core index']
  #allocation1 [shape = 'u32[144,128]{1,0:T(1,128)}', space=vmem, size = 0x12000, scoped, tag = 'internal scratch']
  #allocation2 [shape = 'f32[1,1]{1,0:T(1,128)S(1)}', space=vmem, size = 0x200, scoped, tag = 'scoped memory for tpu_custom_call.1']
  %s0 = inlined_call_operand.vmem [shape: f32[4,128], index: 0, kind: input, shape index: {}]
  %s1 = inlined_call_operand.vmem [shape: f32[32,4], index: 1, kind: input, shape index: {}]
  %s2 = inlined_call_operand.vmem [shape: f32[32,1], index: 2, kind: input, shape index: {}]
  %s3 = inlined_call_operand.vmem [shape: f32[16,32], index: 3, kind: input, shape index: {}]
  %s4 = inlined_call_operand.vmem [shape: f32[16,1], index: 4, kind: input, shape index: {}]
  %s5 = inlined_call_operand.vmem [shape: f32[16,1], index: 5, kind: input, shape index: {}]
  %s6 = inlined_call_operand.<no memory space> [shape: f32[1,1], index: 6, kind: input, shape index: {}]
  %s7 = inlined_call_operand.hbm [shape: f32[1,128], index: 7, kind: output, shape index: {}]
  %s8 = sld [smem:[#allocation0]]
  $region38: #{tpu_custom_call.1} parent=0
    _
  %s10 = ssub.s32 1, %s8
  %s11 = scalar_select 0, %s10, %s8
  %v12 = vstv %s6
  %13 = vst [vmem:[#allocation2] sm:$0x1] %v12
  $region1: #{tpu_custom_call.1} parent=0
    #allocation3 [shape = 'u8[512]{0}', space=vmem, size = 0x400, scoped, tag = 'output window, operand 0, single buffered']
    #allocation4 [shape = 's32[1]{0}', space=sflag, size = 0x4, scoped, tag = 'scoped memory for tpu_custom_call.1']
    %14 = vsyncpa [#allocation4], 0
    // Predicated region
    $region2: #{tpu_custom_call.1} parent=1 // pred_check
      _
    $region3: #{tpu_custom_call.1} parent=1 // pred_check_branch
      %16 = sbr.rel (0) target = $region5
    $region4: #{tpu_custom_call.1} parent=1 // pred_region
      _
    $region5: #{tpu_custom_call.1} parent=1 // pred_fallthru
      _
    // Predicated region
    $region6: #{tpu_custom_call.1} parent=1 // pred_check
      _
    $region7: #{tpu_custom_call.1} parent=1 // pred_check_branch
      %18 = sbr.rel (0) target = $region9
    $region8: #{tpu_custom_call.1} parent=1 // pred_region
      _
    $region9: #{tpu_custom_call.1} parent=1 // pred_fallthru
      _
    // Predicated region
    $region10: #{tpu_custom_call.1} parent=1 // pred_check
      _
    $region11: #{tpu_custom_call.1} parent=1 // pred_check_branch
      %20 = sbr.rel (0) target = $region13
    $region12: #{tpu_custom_call.1} parent=1 // pred_region
      _
    $region13: #{tpu_custom_call.1} parent=1 // pred_fallthru
      _
    // Predicated region
    $region14: #{tpu_custom_call.1} parent=1 // pred_check
      _
    $region15: #{tpu_custom_call.1} parent=1 // pred_check_branch
      %22 = sbr.rel (0) target = $region17
    $region16: #{tpu_custom_call.1} parent=1 // pred_region
      _
    $region17: #{tpu_custom_call.1} parent=1 // pred_fallthru
      _
    // Predicated region
    $region18: #{tpu_custom_call.1} parent=1 // pred_check
      _
    $region19: #{tpu_custom_call.1} parent=1 // pred_check_branch
      %24 = sbr.rel (0) target = $region21
    $region20: #{tpu_custom_call.1} parent=1 // pred_region
      _
    $region21: #{tpu_custom_call.1} parent=1 // pred_fallthru
      _
    // Predicated region
    $region22: #{tpu_custom_call.1} parent=1 // pred_check
      _
    $region23: #{tpu_custom_call.1} parent=1 // pred_check_branch
      %26 = sbr.rel (0) target = $region25
    $region24: #{tpu_custom_call.1} parent=1 // pred_region
      _
    $region25: #{tpu_custom_call.1} parent=1 // pred_fallthru
      _
    // Predicated region
    $region26: #{tpu_custom_call.1} parent=1 // pred_check
      _
    $region27: #{tpu_custom_call.1} parent=1 // pred_check_branch
      %28 = sbr.rel (0) target = $region29
    $region28: #{tpu_custom_call.1} parent=1 // pred_region
      _
    $region29: #{tpu_custom_call.1} parent=1 // pred_fallthru
      _
    %v29 = vld [vmem:[%s0] sm:$0xf]
    %v30 = vld [vmem:[%s1] sm:$0xff]
    %v31 = vld [vmem:[%s1 + $0x8] sm:$0xff]
    %v32 = vld [vmem:[%s1 + $0x10] sm:$0xff]
    %v33 = vld [vmem:[%s1 + $0x18] sm:$0xff]
    %35 = vset.pattern.permute.xlu0 0
    %36 = vperm.xlu0 %35, %v30
    %v37 = vpop.permute.xlu0 %36
    %40 = vset.pattern.permute.xlu0 0
    %41 = vperm.xlu0 %40, %v31
    %v42 = vpop.permute.xlu0 %41
    %45 = vset.pattern.permute.xlu0 0
    %46 = vperm.xlu0 %45, %v32
    %v47 = vpop.permute.xlu0 %46
    %50 = vset.pattern.permute.xlu0 0
    %51 = vperm.xlu0 %50, %v33
    %v52 = vpop.permute.xlu0 %51
    %v54 = vlaneseq
    %v55 = vshrl.u32 %v54, 7
    %v56 = vsub.s32 0, %v55
    %v57 = vrot.slane %v29, %v56
    %v58 = vmul.f32 %v37, %v57
    %v59 = vmul.f32 %v42, %v57
    %v60 = vmul.f32 %v47, %v57
    %v61 = vmul.f32 %v52, %v57
    %62 = vset.pattern.permute.xlu0 1
    %63 = vperm.xlu0 %62, %v30
    %v64 = vpop.permute.xlu0 %63
    %66 = vset.pattern.permute.xlu0 1
    %67 = vperm.xlu0 %66, %v31
    %v68 = vpop.permute.xlu0 %67
    %70 = vset.pattern.permute.xlu0 1
    %71 = vperm.xlu0 %70, %v32
    %v72 = vpop.permute.xlu0 %71
    %74 = vset.pattern.permute.xlu0 1
    %75 = vperm.xlu0 %74, %v33
    %v76 = vpop.permute.xlu0 %75
    %v78 = vlaneseq
    %v79 = vshrl.u32 %v78, 7
    %v80 = vsub.s32 1, %v79
    %v81 = vrot.slane %v29, %v80
    %v82 = vmul.f32 %v64, %v81
    %v83 = vmul.f32 %v68, %v81
    %v84 = vmul.f32 %v72, %v81
    %v85 = vmul.f32 %v76, %v81
    %v86 = vadd.f32 %v58, %v82
    %v87 = vadd.f32 %v59, %v83
    %v88 = vadd.f32 %v60, %v84
    %v89 = vadd.f32 %v61, %v85
    %90 = vset.pattern.permute.xlu0 2
    %91 = vperm.xlu0 %90, %v30
    %v92 = vpop.permute.xlu0 %91
    %94 = vset.pattern.permute.xlu0 2
    %95 = vperm.xlu0 %94, %v31
    %v96 = vpop.permute.xlu0 %95
    %98 = vset.pattern.permute.xlu0 2
    %99 = vperm.xlu0 %98, %v32
    %v100 = vpop.permute.xlu0 %99
    %102 = vset.pattern.permute.xlu0 2
    %103 = vperm.xlu0 %102, %v33
    %v104 = vpop.permute.xlu0 %103
    %v106 = vlaneseq
    %v107 = vshrl.u32 %v106, 7
    %v108 = vsub.s32 2, %v107
    %v109 = vrot.slane %v29, %v108
    %v110 = vmul.f32 %v92, %v109
    %v111 = vmul.f32 %v96, %v109
    %v112 = vmul.f32 %v100, %v109
    %v113 = vmul.f32 %v104, %v109
    %v114 = vadd.f32 %v86, %v110
    %v115 = vadd.f32 %v87, %v111
    %v116 = vadd.f32 %v88, %v112
    %v117 = vadd.f32 %v89, %v113
    %118 = vset.pattern.permute.xlu0 3
    %119 = vperm.xlu0 %118, %v30
    %v120 = vpop.permute.xlu0 %119
    %122 = vset.pattern.permute.xlu0 3
    %123 = vperm.xlu0 %122, %v31
    %v124 = vpop.permute.xlu0 %123
    %126 = vset.pattern.permute.xlu0 3
    %127 = vperm.xlu0 %126, %v32
    %v128 = vpop.permute.xlu0 %127
    %130 = vset.pattern.permute.xlu0 3
    %131 = vperm.xlu0 %130, %v33
    %v132 = vpop.permute.xlu0 %131
    %v134 = vlaneseq
    %v135 = vshrl.u32 %v134, 7
    %v136 = vsub.s32 3, %v135
    %v137 = vrot.slane %v29, %v136
    %v138 = vmul.f32 %v120, %v137
    %v139 = vmul.f32 %v124, %v137
    %v140 = vmul.f32 %v128, %v137
    %v141 = vmul.f32 %v132, %v137
    %v142 = vadd.f32 %v114, %v138
    %v143 = vadd.f32 %v115, %v139
    %v144 = vadd.f32 %v116, %v140
    %v145 = vadd.f32 %v117, %v141
    %v146 = vld [vmem:[%s2] sm:$0xff]
    %v147 = vld [vmem:[%s2 + $0x8] sm:$0xff]
    %v148 = vld [vmem:[%s2 + $0x10] sm:$0xff]
    %v149 = vld [vmem:[%s2 + $0x18] sm:$0xff]
    %151 = vset.pattern.permute.xlu0 0
    %152 = vperm.xlu0 %151, %v146
    %v153 = vpop.permute.xlu0 %152
    %156 = vset.pattern.permute.xlu0 0
    %157 = vperm.xlu0 %156, %v147
    %v158 = vpop.permute.xlu0 %157
    %161 = vset.pattern.permute.xlu0 0
    %162 = vperm.xlu0 %161, %v148
    %v163 = vpop.permute.xlu0 %162
    %166 = vset.pattern.permute.xlu0 0
    %167 = vperm.xlu0 %166, %v149
    %v168 = vpop.permute.xlu0 %167
    %v170 = vadd.f32 %v142, %v153
    %v171 = vadd.f32 %v143, %v158
    %v172 = vadd.f32 %v144, %v163
    %v173 = vadd.f32 %v145, %v168
    %v174 = vmax.f32 %v170, 0.0
    %v175 = vmax.f32 %v171, 0.0
    %v176 = vmax.f32 %v172, 0.0
    %v177 = vmax.f32 %v173, 0.0
    %v178 = vld [vmem:[%s3] sm:$0xff]
    %v179 = vld [vmem:[%s3 + $0x8] sm:$0xff]
    %v180 = vld [vmem:[%s4] sm:$0xff]
    %v181 = vld [vmem:[%s4 + $0x8] sm:$0xff]
    %183 = vset.pattern.permute.xlu0 0
    %184 = vperm.xlu0 %183, %v180
    %v185 = vpop.permute.xlu0 %184
    %188 = vset.pattern.permute.xlu0 0
    %189 = vperm.xlu0 %188, %v181
    %v190 = vpop.permute.xlu0 %189
    %vm192 = vcmask 261120
    %v194 = vsel %vm192, %v178, 0
    %v197 = vsel %vm192, %v179, 0
    %199 = vmatprep.subr.mxu0 0.0
    %200 = vmatpush1.msra.mxu0 0.0
    %201 = vmatprep.subr.mxu0 0.0
    %202 = vmatpush1.msra.mxu0 0.0
    %203 = vmatprep.subr.mxu0 0.0
    %204 = vmatpush1.msra.mxu0 0.0
    %205 = vmatprep.subr.mxu0 0.0
    %206 = vmatpush1.msra.mxu0 0.0
    %207 = vmatprep.subr.mxu0 0.0
    %208 = vmatpush1.msra.mxu0 0.0
    %209 = vmatprep.subr.mxu0 0.0
    %210 = vmatpush1.msra.mxu0 0.0
    %211 = vmatprep.subr.mxu0 0.0
    %212 = vmatpush1.msra.mxu0 0.0
    %213 = vmatprep.subr.mxu0 0.0
    %214 = vmatpush1.msra.mxu0 0.0
    %215 = vmatprep.subr.mxu0 0.0
    %216 = vmatpush1.msra.mxu0 0.0
    %217 = vmatprep.subr.mxu0 0.0
    %218 = vmatpush1.msra.mxu0 0.0
    %219 = vmatprep.subr.mxu0 0.0
    %220 = vmatpush1.msra.mxu0 0.0
    %221 = vmatprep.subr.mxu0 0.0
    %222 = vmatpush1.msra.mxu0 0.0
    %223 = vmatprep.subr.mxu0 0.0
    %224 = vmatpush1.msra.mxu0 %v177
    %225 = vmatprep.subr.mxu0 0.0
    %226 = vmatpush1.msra.mxu0 %v176
    %227 = vmatprep.subr.mxu0 0.0
    %228 = vmatpush1.msra.mxu0 %v175
    %229 = vmatprep.subr.mxu0 0.0
    %230 = vmatpush1.msra.mxu0 %v174
    %231 = vmatprep.subr.mxu0 0.0
    %232 = vmatpush2.msra.mxu0 0.0
    %233 = vmatprep.subr.mxu0 0.0
    %234 = vmatpush2.msra.mxu0 0.0
    %235 = vmatprep.subr.mxu0 0.0
    %236 = vmatpush2.msra.mxu0 0.0
    %237 = vmatprep.subr.mxu0 0.0
    %238 = vmatpush2.msra.mxu0 0.0
    %239 = vmatprep.subr.mxu0 0.0
    %240 = vmatpush2.msra.mxu0 0.0
    %241 = vmatprep.subr.mxu0 0.0
    %242 = vmatpush2.msra.mxu0 0.0
    %243 = vmatprep.subr.mxu0 0.0
    %244 = vmatpush2.msra.mxu0 0.0
    %245 = vmatprep.subr.mxu0 0.0
    %246 = vmatpush2.msra.mxu0 0.0
    %247 = vmatprep.subr.mxu0 0.0
    %248 = vmatpush2.msra.mxu0 0.0
    %249 = vmatprep.subr.mxu0 0.0
    %250 = vmatpush2.msra.mxu0 0.0
    %251 = vmatprep.subr.mxu0 0.0
    %252 = vmatpush2.msra.mxu0 0.0
    %253 = vmatprep.subr.mxu0 0.0
    %254 = vmatpush2.msra.mxu0 0.0
    %255 = vmatprep.subr.mxu0 0.0
    %256 = vmatpush2.msra.mxu0 0.0
    %257 = vmatprep.subr.mxu0 0.0
    %258 = vmatpush2.msra.mxu0 0.0
    %259 = vmatprep.subr.mxu0 0.0
    %260 = vmatpush2.msra.mxu0 0.0
    %261 = vmatprep.subr.mxu0 0.0
    %262 = vmatpush2.msra.mxu0 0.0
    %263 = vmatprep.mubr.f32.mxu0 0.0
    %264 = vmatmul.mubr.f32.gmra.mxu0 %v194
    %v265 = vpop.f32.mrf.mxu0
    %v266 = vadd.f32 %v185, %v265
    %v267 = vpop.f32.mrf.mxu0
    %268 = vmatprep.mubr.f32.mxu0 0.0
    %269 = vmatmul.mubr.f32.gmra.mxu0 %v197
    %v270 = vpop.f32.mrf.mxu0
    %v271 = vadd.f32 %v190, %v270
    %v272 = vpop.f32.mrf.mxu0
    %273 = vdwg.mxu0
    %v274 = vmax.f32 %v266, 0.0
    %v275 = vmax.f32 %v271, 0.0
    %v276 = vld [vmem:[%s5] sm:$0xff]
    %v277 = vld [vmem:[%s5 + $0x8] sm:$0xff]
    %279 = vset.pattern.permute.xlu0 0
    %280 = vperm.xlu0 %279, %v276
    %v281 = vpop.permute.xlu0 %280
    %284 = vset.pattern.permute.xlu0 0
    %285 = vperm.xlu0 %284, %v277
    %v286 = vpop.permute.xlu0 %285
    %v288 = vmul.f32 %v274, %v281
    %v289 = vmul.f32 %v275, %v286
    %v290 = vadd.f32 %v288, %v289
    %v291 = vrot.slane %v290, 4
    %v292 = vadd.f32 %v290, %v291
    %v293 = vrot.slane %v292, 2
    %v294 = vadd.f32 %v292, %v293
    %v295 = vrot.slane %v294, 1
    %v296 = vadd.f32 %v294, %v295
    %v297 = vld [vmem:[#allocation2] sm:$0x1]
    %299 = vset.pattern.permute.xlu0 0
    %300 = vperm.xlu0 %299, %v297
    %v301 = vpop.permute.xlu0 %300
    %v303 = vlaneseq
    %v304 = vshrl.u32 %v303, 7
    %v305 = vsub.s32 0, %v304
    %v306 = vrot.slane %v301, %v305
    %v307 = vadd.f32 %v296, %v306
    %v308 = vxor.u32 %v307, 2147483648
    %v309 = vmul.f32 %v308, 1.442695
    %v310 = vpow.pop %v309
    %v311 = vadd.f32 %v310, 1.0
    %v312 = vrcp.pop %v311
    %v313 = vmul.f32 1.0, %v312
    %314 = vst [vmem:[#allocation3] sm:$0x1] %v313
    // Predicated region
    $region30: #{tpu_custom_call.1} parent=1 // pred_check
      _
    $region31: #{tpu_custom_call.1} parent=1 // pred_check_branch
      %316 = sbr.rel (0) target = $region33
    $region32: #{tpu_custom_call.1} parent=1 // pred_region
      %s318 = ssub.s32 16, 16
      %319 = vsyncadd [#allocation4], %s318
      %s321 = sshll.u32 [#allocation3], 4
      %s322 = int_to_ptr.vmem [resolvable:$true] %s321
      %324 = dma.vmem_to_hbm [thread:$0]  %s322, 16, %s7, [#allocation4]
    $region33: #{tpu_custom_call.1} parent=1 // pred_fallthru
      _
    // Predicated region
    $region34: #{tpu_custom_call.1} parent=1 // pred_check
      _
    $region35: #{tpu_custom_call.1} parent=1 // pred_check_branch
      %326 = sbr.rel (0) target = $region37
    $region36: #{tpu_custom_call.1} parent=1 // pred_region
      %327 = dma.done [#allocation4], 16
    $region37: #{tpu_custom_call.1} parent=1 // pred_fallthru
      _
    %328 = vsyncpa [#allocation4], 1

</llo_original>
